<compile_context>
chip_gen: v5e
topology: v5e:2x2
jax: 0.10.0
libtpu: 0.0.40
codegen_flags: <defaults>
</compile_context>

<pallas_src>
import jax
import jax.numpy as jnp
from jax.experimental import pallas as pl
from jax.experimental.pallas import tpu as pltpu


# ----------------------------------------------------------------------------
# Small path: single invocation, everything resident in VMEM, no grid.
# ----------------------------------------------------------------------------
def _vl_small_kernel(x_ref, w_ref, b_ref, o_ref):
    # x_ref: (E, B, IN), w_ref: (E, IN, OUT), b_ref: (E, 1, OUT), o_ref: (E, B, OUT)
    acc = jnp.einsum(
        "ebi,eio->ebo", x_ref[...], w_ref[...],
        preferred_element_type=jnp.float32)                  # batched MXU matmul, f32 acc
    o_ref[...] = (acc + b_ref[...].astype(jnp.float32)).astype(o_ref.dtype)


def _vectorized_linear_small(x, weight, bias):
    E, B, IN = x.shape
    OUT = weight.shape[2]
    # No grid / no BlockSpecs: each operand is one whole-array VMEM block, so there
    # is zero per-grid-step overhead and a single DMA per operand.  (At OUT < 128
    # the stores are lane-masked, but the whole problem is a few KiB so that cost
    # is negligible; the tiled path below is fully lane-dense.)
    return pl.pallas_call(
        _vl_small_kernel,
        out_shape=jax.ShapeDtypeStruct((E, B, OUT), x.dtype),
    )(x, weight, bias)


# ----------------------------------------------------------------------------
# Tiled path: grid = (E, M tiles, N tiles, K tiles), f32 accumulator in VMEM.
# ----------------------------------------------------------------------------
def _vl_tiled_kernel(x_ref, w_ref, b_ref, o_ref, acc_ref):
    # Ensemble dim is squeezed out of every ref:
    #   x_ref: (tm, tk), w_ref: (tk, tn), b_ref: (1, tn), o_ref/acc_ref: (tm, tn)
    k = pl.program_id(3)

    @pl.when(k == 0)
    def _init():
        acc_ref[...] = jnp.zeros_like(acc_ref)

    acc_ref[...] += jnp.dot(x_ref[...], w_ref[...],
                            preferred_element_type=jnp.float32)

    @pl.when(k == pl.num_programs(3) - 1)
    def _finalize():
        o_ref[...] = (acc_ref[...] + b_ref[...].astype(jnp.float32)
                      ).astype(o_ref.dtype)


def _vectorized_linear_tiled(x, weight, bias, *, tm=256, tn=256, tk=512):
    """x: (E, B, IN), weight: (E, IN, OUT), bias: (E, 1, OUT) -> (E, B, OUT).

    Default tiles (f32): 2*(tm*tk + tk*tn + tm*tn)*4B ~= 2.8 MiB double-buffered,
    leaving ample headroom on v7x's 64 MiB VMEM.  All tiles are 128-multiples
    (native MXU tile on v5e), and tn is a multiple of 128 so output stores are
    unmasked lane-dense vst's.
    """
    E, B, IN = x.shape
    OUT = weight.shape[2]

    tm, tn, tk = min(tm, B), min(tn, OUT), min(tk, IN)
    if (B % tm) or (OUT % tn) or (IN % tk):
        raise ValueError(
            f"Tiled path needs tile-divisible shapes: B={B}%{tm}, OUT={OUT}%{tn}, "
            f"IN={IN}%{tk}. Pad, or use the small path if it fits VMEM.")

    grid = (E, B // tm, OUT // tn, IN // tk)
    return pl.pallas_call(
        _vl_tiled_kernel,
        out_shape=jax.ShapeDtypeStruct((E, B, OUT), x.dtype),
        grid_spec=pltpu.PrefetchScalarGridSpec(
            num_scalar_prefetch=0,
            grid=grid,
            in_specs=[
                # x: (E, B, IN) -> (tm, tk) tile for ensemble member e
                pl.BlockSpec((pl.Squeezed(), tm, tk), lambda e, m, n, k: (e, m, k)),
                # weight: (E, IN, OUT) -> (tk, tn) tile
                # (default double-buffering; bump to pipeline_mode=pl.Buffered(3)
                #  only if the weight DMA is measured as exposed)
                pl.BlockSpec((pl.Squeezed(), tk, tn), lambda e, m, n, k: (e, k, n)),
                # bias: (E, 1, OUT) -> (1, tn) tile (broadcast over tm in-kernel)
                pl.BlockSpec((pl.Squeezed(), 1, tn), lambda e, m, n, k: (e, 0, n)),
            ],
            out_specs=pl.BlockSpec((pl.Squeezed(), tm, tn),
                                   lambda e, m, n, k: (e, m, n)),
            scratch_shapes=[pltpu.VMEM((tm, tn), jnp.float32)],
        ),
        compiler_params=pltpu.CompilerParams(
            dimension_semantics=("parallel", "parallel", "parallel", "arbitrary")),
    )(x, weight, bias)


# ----------------------------------------------------------------------------
# Public wrapper: dispatch on problem size.
# ----------------------------------------------------------------------------
def vectorized_linear(x, weight, bias, *, vmem_budget_bytes=8 << 20,
                      tm=256, tn=256, tk=512):
    """Ensemble linear: (E,B,IN) @ (E,IN,OUT) + (E,1,OUT) -> (E,B,OUT)."""
    E, B, IN = x.shape
    OUT = weight.shape[2]
    itemsize = jnp.dtype(x.dtype).itemsize
    footprint = (x.size + weight.size + bias.size + E * B * OUT) * itemsize
    if footprint <= vmem_budget_bytes:
        return _vectorized_linear_small(x, weight, bias)
    return _vectorized_linear_tiled(x, weight, bias, tm=tm, tn=tn, tk=tk)


if __name__ == "__main__":
    key = jax.random.PRNGKey(0)
    k_w, k_x, k_w2, k_b2, k_x2 = jax.random.split(key, 5)

    # ---- 1) Small shapes matching the module (ensemble=4, batch=8, in=out=32):
    #         exercises the gridless single-invocation path. ----
    E, B, IN, OUT = 4, 8, 32, 32
    weight = (0.33 * jax.random.normal(k_w, (E, IN, OUT))).astype(jnp.float32)  # Normal(0, 0.33)
    bias = jnp.zeros((E, 1, OUT), dtype=jnp.float32)                            # zeros init
    x = jax.random.normal(k_x, (E, B, IN), dtype=jnp.float32)

    out = jax.block_until_ready(vectorized_linear(x, weight, bias))
    ref = jnp.einsum("ebi,eio->ebo", x, weight) + bias
    assert out.shape == (E, B, OUT)
    assert jnp.allclose(out, ref, atol=1e-5, rtol=1e-5)

    # ---- 2) Larger shapes, forced through the tiled M/N/K path
    #         (grid = (2, 2, 2, 4) with tm=tn=tk=128; checks accumulator logic). ----
    E2, B2, IN2, OUT2 = 2, 256, 512, 256
    weight2 = (0.02 * jax.random.normal(k_w2, (E2, IN2, OUT2))).astype(jnp.float32)
    bias2 = (0.1 * jax.random.normal(k_b2, (E2, 1, OUT2))).astype(jnp.float32)
    x2 = jax.random.normal(k_x2, (E2, B2, IN2), dtype=jnp.float32)

    out2 = jax.block_until_ready(
        _vectorized_linear_tiled(x2, weight2, bias2, tm=128, tn=128, tk=128))
    ref2 = jnp.einsum("ebi,eio->ebo", x2, weight2) + bias2
    assert out2.shape == (E2, B2, OUT2)
    assert jnp.allclose(out2, ref2, atol=2e-3, rtol=2e-3)

    print("KERNEL_OK")
</pallas_src>

<mosaic_0001>
module attributes {stable_mosaic.version = 11 : i64} {
  func.func @_vl_small_kernel(%arg0: memref<4x8x32xf32, #tpu.memory_space<vmem>>, %arg1: memref<4x32x32xf32, #tpu.memory_space<vmem>>, %arg2: memref<4x1x32xf32, #tpu.memory_space<vmem>>, %arg3: memref<4x8x32xf32, #tpu.memory_space<vmem>>) attributes {dimension_semantics = [], scalar_prefetch = 0 : i64, scratch_operands = 0 : i64, tpu.core_type = #tpu.core_type<tc>} {
    %c0 = arith.constant 0 : index
    %c0_0 = arith.constant 0 : index
    %c0_1 = arith.constant 0 : index
    %0 = vector.load %arg0[%c0, %c0_0, %c0_1] : memref<4x8x32xf32, #tpu.memory_space<vmem>>, vector<4x8x32xf32>
    %c0_2 = arith.constant 0 : index
    %c0_3 = arith.constant 0 : index
    %c0_4 = arith.constant 0 : index
    %1 = vector.load %arg1[%c0_2, %c0_3, %c0_4] : memref<4x32x32xf32, #tpu.memory_space<vmem>>, vector<4x32x32xf32>
    "tpu.trace_start"() <{level = 10 : i32, message = "ebi,eio->ebo"}> : () -> ()
    %cst = arith.constant dense<0.000000e+00> : vector<4x8x32xf32>
    %2 = tpu.matmul %0, %1, %cst {dimension_numbers = #tpu.dot_dimension_numbers<[2], [1], [1], [2], [0, 0, 0, 1, 1, 2], [0], [0]>} : vector<4x8x32xf32>, vector<4x32x32xf32>, vector<4x8x32xf32> -> vector<4x8x32xf32>
    "tpu.trace_stop"() : () -> ()
    %c0_5 = arith.constant 0 : index
    %c0_6 = arith.constant 0 : index
    %c0_7 = arith.constant 0 : index
    %3 = vector.load %arg2[%c0_5, %c0_6, %c0_7] : memref<4x1x32xf32, #tpu.memory_space<vmem>>, vector<4x1x32xf32>
    %4 = vector.broadcast %3 : vector<4x1x32xf32> to vector<4x8x32xf32>
    %5 = arith.addf %2, %4 : vector<4x8x32xf32>
    %c0_8 = arith.constant 0 : index
    %c0_9 = arith.constant 0 : index
    %c0_10 = arith.constant 0 : index
    %6 = vector.load %arg3[%c0_8, %c0_9, %c0_10] : memref<4x8x32xf32, #tpu.memory_space<vmem>>, vector<4x8x32xf32>
    tpu.vector_store %arg3[%c0_8, %c0_9, %c0_10], %5 {strides = array<i32>} : memref<4x8x32xf32, #tpu.memory_space<vmem>>, vector<4x8x32xf32>,
    return
  }
}

</mosaic_0001>

<llo_original>
// kernel: tpu_custom_call.1
$region0: #{tpu_custom_call.1}
  #allocation0 [shape = 'u32[]', space=smem, size = 0x4, offset = 0x4, fixed_abs, tag = 'smem constant byte address 0x4 - core index']
  #allocation1 [shape = 'u32[72,128]{1,0:T(1,128)}', space=vmem, size = 0x9000, scoped, tag = 'internal scratch']
  %s0 = inlined_call_operand.hbm [shape: f32[4,8,32], index: 0, kind: input, shape index: {}]
  %s1 = inlined_call_operand.hbm [shape: f32[4,32,32], index: 1, kind: input, shape index: {}]
  %s2 = inlined_call_operand.hbm [shape: f32[4,1,32], index: 2, kind: input, shape index: {}]
  %s3 = inlined_call_operand.hbm [shape: f32[4,8,32], index: 3, kind: output, shape index: {}]
  %s4 = sld [smem:[#allocation0]]
  $region34: #{tpu_custom_call.1} parent=0
    _
  %s6 = ssub.s32 1, %s4
  %s7 = scalar_select 0, %s6, %s4
  $region1: #{tpu_custom_call.1} parent=0
    #allocation2 [shape = 'u8[16384]{0}', space=vmem, size = 0x4000, scoped, tag = 'input window, operand 0, single buffered']
    #allocation3 [shape = 's32[1]{0}', space=sflag, size = 0x4, scoped, tag = 'scoped memory for tpu_custom_call.1']
    #allocation4 [shape = 's32[1]{0}', space=sflag, size = 0x4, scoped, tag = 'scoped memory for tpu_custom_call.1']
    #allocation5 [shape = 'u8[65536]{0}', space=vmem, size = 0x10000, scoped, tag = 'input window, operand 1, single buffered']
    #allocation6 [shape = 's32[1]{0}', space=sflag, size = 0x4, scoped, tag = 'scoped memory for tpu_custom_call.1']
    #allocation7 [shape = 'u8[2048]{0}', space=vmem, size = 0x800, scoped, tag = 'input window, operand 2, single buffered']
    #allocation8 [shape = 'u8[16384]{0}', space=vmem, size = 0x4000, scoped, tag = 'output window, operand 0, single buffered']
    %8 = vsyncpa [#allocation3], 0
    %9 = vsyncpa [#allocation6], 0
    %10 = vsyncpa [#allocation4], 0
    // Predicated region
    $region2: #{tpu_custom_call.1} parent=1 // pred_check
      _
    $region3: #{tpu_custom_call.1} parent=1 // pred_check_branch
      %12 = sbr.rel (0) target = $region5
    $region4: #{tpu_custom_call.1} parent=1 // pred_region
      %14 = vsyncadd [#allocation3], 0
      %s15 = sshll.u32 %s0, 4
      %s16 = int_to_ptr.hbm [resolvable:$true] %s15
      %s17 = sshll.u32 [#allocation2], 4
      %s18 = int_to_ptr.vmem [resolvable:$true] %s17
      %23 = dma.hbm_to_vmem [thread:$0]  %s16, 512, %s18, [#allocation3], 128, 128, 8
    $region5: #{tpu_custom_call.1} parent=1 // pred_fallthru
      _
    // Predicated region
    $region6: #{tpu_custom_call.1} parent=1 // pred_check
      _
    $region7: #{tpu_custom_call.1} parent=1 // pred_check_branch
      %25 = sbr.rel (0) target = $region9
    $region8: #{tpu_custom_call.1} parent=1 // pred_region
      %27 = vsyncadd [#allocation6], 0
      %s28 = sshll.u32 %s1, 4
      %s29 = int_to_ptr.hbm [resolvable:$true] %s28
      %s30 = sshll.u32 [#allocation5], 4
      %s31 = int_to_ptr.vmem [resolvable:$true] %s30
      %36 = dma.hbm_to_vmem [thread:$0]  %s29, 2048, %s31, [#allocation6], 128, 128, 8
    $region9: #{tpu_custom_call.1} parent=1 // pred_fallthru
      _
    // Predicated region
    $region10: #{tpu_custom_call.1} parent=1 // pred_check
      _
    $region11: #{tpu_custom_call.1} parent=1 // pred_check_branch
      %38 = sbr.rel (0) target = $region13
    $region12: #{tpu_custom_call.1} parent=1 // pred_region
      %40 = vsyncadd [#allocation6], 0
      %s41 = sshll.u32 %s2, 4
      %s42 = int_to_ptr.hbm [resolvable:$true] %s41
      %s43 = sshll.u32 [#allocation7], 4
      %s44 = int_to_ptr.vmem [resolvable:$true] %s43
      %49 = dma.hbm_to_vmem [thread:$0]  %s42, 64, %s44, [#allocation6], 16, 16, 1
    $region13: #{tpu_custom_call.1} parent=1 // pred_fallthru
      _
    // Predicated region
    $region14: #{tpu_custom_call.1} parent=1 // pred_check
      _
    $region15: #{tpu_custom_call.1} parent=1 // pred_check_branch
      %51 = sbr.rel (0) target = $region17
    $region16: #{tpu_custom_call.1} parent=1 // pred_region
      %53 = dma.done [#allocation3], 512
    $region17: #{tpu_custom_call.1} parent=1 // pred_fallthru
      _
    // Predicated region
    $region18: #{tpu_custom_call.1} parent=1 // pred_check
      _
    $region19: #{tpu_custom_call.1} parent=1 // pred_check_branch
      %55 = sbr.rel (0) target = $region21
    $region20: #{tpu_custom_call.1} parent=1 // pred_region
      %57 = dma.done [#allocation6], 2048
    $region21: #{tpu_custom_call.1} parent=1 // pred_fallthru
      _
    // Predicated region
    $region22: #{tpu_custom_call.1} parent=1 // pred_check
      _
    $region23: #{tpu_custom_call.1} parent=1 // pred_check_branch
      %59 = sbr.rel (0) target = $region25
    $region24: #{tpu_custom_call.1} parent=1 // pred_region
      %61 = dma.done [#allocation6], 64
    $region25: #{tpu_custom_call.1} parent=1 // pred_fallthru
      _
    %v62 = vld [vmem:[#allocation2] sm:$0xff]
    %v63 = vld [vmem:[#allocation2 + $0x8] sm:$0xff]
    %v64 = vld [vmem:[#allocation2 + $0x10] sm:$0xff]
    %v65 = vld [vmem:[#allocation2 + $0x18] sm:$0xff]
    %v66 = vld [vmem:[#allocation5] sm:$0xff]
    %v67 = vld [vmem:[#allocation5 + $0x8] sm:$0xff]
    %v68 = vld [vmem:[#allocation5 + $0x10] sm:$0xff]
    %v69 = vld [vmem:[#allocation5 + $0x18] sm:$0xff]
    %v70 = vld [vmem:[#allocation5 + $0x20] sm:$0xff]
    %v71 = vld [vmem:[#allocation5 + $0x28] sm:$0xff]
    %v72 = vld [vmem:[#allocation5 + $0x30] sm:$0xff]
    %v73 = vld [vmem:[#allocation5 + $0x38] sm:$0xff]
    %v74 = vld [vmem:[#allocation5 + $0x40] sm:$0xff]
    %v75 = vld [vmem:[#allocation5 + $0x48] sm:$0xff]
    %v76 = vld [vmem:[#allocation5 + $0x50] sm:$0xff]
    %v77 = vld [vmem:[#allocation5 + $0x58] sm:$0xff]
    %v78 = vld [vmem:[#allocation5 + $0x60] sm:$0xff]
    %v79 = vld [vmem:[#allocation5 + $0x68] sm:$0xff]
    %v80 = vld [vmem:[#allocation5 + $0x70] sm:$0xff]
    %v81 = vld [vmem:[#allocation5 + $0x78] sm:$0xff]
    %v82 = vld [vmem:[#allocation7] sm:$0x1]
    %v83 = vld [vmem:[#allocation7 + $0x1] sm:$0x1]
    %v84 = vld [vmem:[#allocation7 + $0x2] sm:$0x1]
    %v85 = vld [vmem:[#allocation7 + $0x3] sm:$0x1]
    %v90 = vperm.slane %v82, 0
    %v91 = vperm.slane %v83, 0
    %v92 = vperm.slane %v84, 0
    %v93 = vperm.slane %v85, 0
    %vm98 = vcmask 261120
    %v100 = vsel %vm98, %v62, 0
    %102 = vmatpush.msra.mxu0 0.0
    %103 = vmatpush.msra.mxu0 0.0
    %104 = vmatpush.msra.mxu0 0.0
    %105 = vmatpush.msra.mxu0 0.0
    %106 = vmatpush.msra.mxu0 0.0
    %107 = vmatpush.msra.mxu0 0.0
    %108 = vmatpush.msra.mxu0 0.0
    %109 = vmatpush.msra.mxu0 0.0
    %110 = vmatpush.msra.mxu0 0.0
    %111 = vmatpush.msra.mxu0 0.0
    %112 = vmatpush.msra.mxu0 0.0
    %113 = vmatpush.msra.mxu0 0.0
    %114 = vmatpush.msra.mxu0 %v69
    %115 = vmatpush.msra.mxu0 %v68
    %116 = vmatpush.msra.mxu0 %v67
    %117 = vmatpush.msra.mxu0 %v66
    %118 = vmatmul.f32.gmra.mxu0 %v100
    %v119 = vpop.f32.mrf.mxu0
    %v120 = vadd.f32 %v90, %v119
    %121 = vdwg.mxu0
    %v123 = vsel %vm98, %v63, 0
    %125 = vmatpush.msra.mxu0 0.0
    %126 = vmatpush.msra.mxu0 0.0
    %127 = vmatpush.msra.mxu0 0.0
    %128 = vmatpush.msra.mxu0 0.0
    %129 = vmatpush.msra.mxu0 0.0
    %130 = vmatpush.msra.mxu0 0.0
    %131 = vmatpush.msra.mxu0 0.0
    %132 = vmatpush.msra.mxu0 0.0
    %133 = vmatpush.msra.mxu0 0.0
    %134 = vmatpush.msra.mxu0 0.0
    %135 = vmatpush.msra.mxu0 0.0
    %136 = vmatpush.msra.mxu0 0.0
    %137 = vmatpush.msra.mxu0 %v73
    %138 = vmatpush.msra.mxu0 %v72
    %139 = vmatpush.msra.mxu0 %v71
    %140 = vmatpush.msra.mxu0 %v70
    %141 = vmatmul.f32.gmra.mxu0 %v123
    %v142 = vpop.f32.mrf.mxu0
    %v143 = vadd.f32 %v91, %v142
    %144 = vdwg.mxu0
    %v146 = vsel %vm98, %v64, 0
    %148 = vmatpush.msra.mxu0 0.0
    %149 = vmatpush.msra.mxu0 0.0
    %150 = vmatpush.msra.mxu0 0.0
    %151 = vmatpush.msra.mxu0 0.0
    %152 = vmatpush.msra.mxu0 0.0
    %153 = vmatpush.msra.mxu0 0.0
    %154 = vmatpush.msra.mxu0 0.0
    %155 = vmatpush.msra.mxu0 0.0
    %156 = vmatpush.msra.mxu0 0.0
    %157 = vmatpush.msra.mxu0 0.0
    %158 = vmatpush.msra.mxu0 0.0
    %159 = vmatpush.msra.mxu0 0.0
    %160 = vmatpush.msra.mxu0 %v77
    %161 = vmatpush.msra.mxu0 %v76
    %162 = vmatpush.msra.mxu0 %v75
    %163 = vmatpush.msra.mxu0 %v74
    %164 = vmatmul.f32.gmra.mxu0 %v146
    %v165 = vpop.f32.mrf.mxu0
    %v166 = vadd.f32 %v92, %v165
    %167 = vdwg.mxu0
    %v169 = vsel %vm98, %v65, 0
    %171 = vmatpush.msra.mxu0 0.0
    %172 = vmatpush.msra.mxu0 0.0
    %173 = vmatpush.msra.mxu0 0.0
    %174 = vmatpush.msra.mxu0 0.0
    %175 = vmatpush.msra.mxu0 0.0
    %176 = vmatpush.msra.mxu0 0.0
    %177 = vmatpush.msra.mxu0 0.0
    %178 = vmatpush.msra.mxu0 0.0
    %179 = vmatpush.msra.mxu0 0.0
    %180 = vmatpush.msra.mxu0 0.0
    %181 = vmatpush.msra.mxu0 0.0
    %182 = vmatpush.msra.mxu0 0.0
    %183 = vmatpush.msra.mxu0 %v81
    %184 = vmatpush.msra.mxu0 %v80
    %185 = vmatpush.msra.mxu0 %v79
    %186 = vmatpush.msra.mxu0 %v78
    %187 = vmatmul.f32.gmra.mxu0 %v169
    %v188 = vpop.f32.mrf.mxu0
    %v189 = vadd.f32 %v93, %v188
    %190 = vdwg.mxu0
    %191 = vst.msk [vmem:[#allocation8] sm:$0xff] %vm98, %v120
    %192 = vst.msk [vmem:[#allocation8 + $0x8] sm:$0xff] %vm98, %v143
    %193 = vst.msk [vmem:[#allocation8 + $0x10] sm:$0xff] %vm98, %v166
    %194 = vst.msk [vmem:[#allocation8 + $0x18] sm:$0xff] %vm98, %v189
    // Predicated region
    $region26: #{tpu_custom_call.1} parent=1 // pred_check
      _
    $region27: #{tpu_custom_call.1} parent=1 // pred_check_branch
      %196 = sbr.rel (0) target = $region29
    $region28: #{tpu_custom_call.1} parent=1 // pred_region
      %198 = vsyncadd [#allocation4], 0
      %s199 = sshll.u32 [#allocation8], 4
      %s200 = int_to_ptr.vmem [resolvable:$true] %s199
      %s201 = sshll.u32 %s3, 4
      %s202 = int_to_ptr.hbm [resolvable:$true] %s201
      %207 = dma.vmem_to_hbm [thread:$0]  %s200, 512, %s202, [#allocation4], 128, 128, 8
    $region29: #{tpu_custom_call.1} parent=1 // pred_fallthru
      _
    // Predicated region
    $region30: #{tpu_custom_call.1} parent=1 // pred_check
      _
    $region31: #{tpu_custom_call.1} parent=1 // pred_check_branch
      %209 = sbr.rel (0) target = $region33
    $region32: #{tpu_custom_call.1} parent=1 // pred_region
      %211 = dma.done [#allocation4], 512
    $region33: #{tpu_custom_call.1} parent=1 // pred_fallthru
      _
    %212 = vsyncpa [#allocation3], 1
    %213 = vsyncpa [#allocation6], 1
    %214 = vsyncpa [#allocation4], 1

</llo_original>
